<compile_context>
chip_gen: v7x
topology: tpu7x:2x2x1
jax: 0.10.0
libtpu: 0.0.40
codegen_flags: <defaults>
</compile_context>

<pallas_src>
import math

import jax
import jax.numpy as jnp
from jax.experimental import pallas as pl
from jax.experimental.pallas import tpu as pltpu


def _cdiv(a, b):
    return -(-a // b)


def _round_up(x, m):
    return ((x + m - 1) // m) * m


def _make_fused_kan_kernel(num_layers):
    """Kernel fusing `num_layers` x (Linear[BN+0.5 folded] + SiLU).

    Ref order: x_ref, w0, b0, w1, b1, ..., o_ref (all VMEM).
    x / W are bf16 (MXU path); biases, activations and SiLU math are f32.
    """

    def kernel(*refs):
        x_ref = refs[0]
        o_ref = refs[-1]
        param_refs = refs[1:-1]

        h = x_ref[...]                          # bf16 (tb, in_f)
        for l in range(num_layers):
            w = param_refs[2 * l][...]          # bf16 (in_f, out_f)
            b = param_refs[2 * l + 1][...]      # f32  (1, out_f)
            # z = 0.5 * (Linear+BN pre-activation); bf16 MXU matmul, f32 acc.
            z = jnp.dot(h, w, preferred_element_type=jnp.float32) + b
            # SiLU(2z) = z + z*tanh(z); tanh runs on the otherwise-idle EUP slot.
            a = z + z * jnp.tanh(z)
            h = a if l == num_layers - 1 else a.astype(jnp.bfloat16)
        o_ref[...] = h.astype(o_ref.dtype)

    return kernel


def kan_forward(x, fused_params, *, block_batch=2048, megacore_min_rows=1024):
    """Fused forward pass: one pallas_call for the whole network."""
    num_layers = len(fused_params)
    B, in_f = x.shape
    out_f = fused_params[-1][0].shape[1]

    # Row tiling: minimize padding (tb ~= B / num_steps, rounded to 16 for bf16
    # sublane packing), and force >=2 grid steps for large B so v7x's second
    # TensorCore gets work via the "parallel" grid axis.
    num_steps = _cdiv(B, block_batch)
    if num_steps == 1 and B >= megacore_min_rows:
        num_steps = 2
    tb = _round_up(_cdiv(B, num_steps), 16)
    b_pad = num_steps * tb
    if b_pad != B:
        x = jnp.pad(x, ((0, b_pad - B), (0, 0)))
    x = x.astype(jnp.bfloat16)  # bf16 matmul path; halves the input DMA bytes.

    # Activations tile over the batch grid; weights/biases are full-array blocks
    # with a constant index_map so they stay VMEM-resident across grid steps.
    in_specs = [pl.BlockSpec((tb, in_f), lambda i: (i, 0))]
    flat_params = []
    for (w, b) in fused_params:
        in_specs.append(pl.BlockSpec(w.shape, lambda i: (0, 0)))
        in_specs.append(pl.BlockSpec(b.shape, lambda i: (0, 0)))
        flat_params.extend((w, b))

    out = pl.pallas_call(
        _make_fused_kan_kernel(num_layers),
        out_shape=jax.ShapeDtypeStruct((b_pad, out_f), jnp.float32),
        grid=(num_steps,),
        in_specs=in_specs,
        out_specs=pl.BlockSpec((tb, out_f), lambda i: (i, 0)),
        compiler_params=pltpu.CompilerParams(
            dimension_semantics=("parallel",)),
    )(x, *flat_params)
    return out[:B]


kan_forward_jit = jax.jit(kan_forward)


def init_kan_params(key, layers_hidden):
    """Deterministic raw parameters matching the PyTorch module's shapes."""
    params = []
    for in_f, out_f in zip(layers_hidden, layers_hidden[1:]):
        key, kw, kb, kg, kbe, km, kv = jax.random.split(key, 7)
        bound = 1.0 / math.sqrt(in_f)
        # nn.Linear: weight (out,in) ~ U(-1/sqrt(in), 1/sqrt(in)); stored (in,out).
        w = jax.random.uniform(kw, (in_f, out_f), jnp.float32, -bound, bound)
        b = jax.random.uniform(kb, (1, out_f), jnp.float32, -bound, bound)
        # nn.BatchNorm1d(out_f): gamma, beta, running_mean, running_var.
        gamma = 1.0 + 0.1 * jax.random.normal(kg, (1, out_f), jnp.float32)
        beta = 0.1 * jax.random.normal(kbe, (1, out_f), jnp.float32)
        running_mean = 0.1 * jax.random.normal(km, (1, out_f), jnp.float32)
        running_var = jnp.abs(
            1.0 + 0.1 * jax.random.normal(kv, (1, out_f), jnp.float32))
        params.append((w, b, gamma, beta, running_mean, running_var))
    return params


def fold_bn_silu_into_linear(raw_params, eps=1e-5):
    """Fold eval-mode BN, the Linear bias, and SiLU's 0.5 into (W'', b'').

    z = x @ W'' + b'' is half the Linear+BN pre-activation, so
    SiLU(pre_act) = z + z*tanh(z).  W'' is cast to bf16 for the MXU path.
    """
    fused = []
    for (w, b, gamma, beta, mean, var) in raw_params:
        scale = gamma / jnp.sqrt(var + eps)                        # (1, out)
        w_f = (0.5 * w * scale).astype(jnp.bfloat16)               # (in, out)
        b_f = (0.5 * (b * scale + beta - mean * scale)).astype(jnp.float32)
        fused.append((w_f, b_f))
    return fused


def kan_forward_ref(x, raw_params, eps=1e-5):
    """Pure-f32 JAX reference of the original module (eval mode)."""
    for (w, b, gamma, beta, mean, var) in raw_params:
        y = x @ w + b
        z = gamma * (y - mean) / jnp.sqrt(var + eps) + beta
        x = z * jax.nn.sigmoid(z)
    return x


def kan_forward_ref_bf16(x, fused_params):
    """Reference reproducing the kernel's bf16-matmul / f32-elementwise numerics,
    but with the standard z*sigmoid(z) SiLU (validates the algebraic folds)."""
    h = x.astype(jnp.bfloat16)
    out = None
    for (w, b) in fused_params:
        half = jnp.dot(h, w, preferred_element_type=jnp.float32) + b
        z = 2.0 * half
        out = z * jax.nn.sigmoid(z)
        h = out.astype(jnp.bfloat16)
    return out


if __name__ == "__main__":
    layers_hidden = [32, 64, 32, 16]
    batch = 8

    key = jax.random.PRNGKey(0)
    key, kx = jax.random.split(key)
    x = jax.random.normal(kx, (batch, layers_hidden[0]), jnp.float32)

    raw_params = init_kan_params(key, layers_hidden)
    fused_params = fold_bn_silu_into_linear(raw_params)

    out = kan_forward_jit(x, fused_params)
    out = jax.block_until_ready(out)

    assert out.shape == (batch, layers_hidden[-1])
    assert out.dtype == jnp.float32

    # Tight check vs a reference matching the kernel's bf16/f32 numerics.
    ref_bf16 = kan_forward_ref_bf16(x, fused_params)
    assert jnp.allclose(out, ref_bf16, atol=5e-3, rtol=5e-3), \
        "mismatch vs bf16-matched reference"

    # Loose sanity check vs the pure-f32 reference of the original module
    # (bf16 matmul inputs introduce ~1e-3 relative error over three layers).
    ref_f32 = kan_forward_ref(x, raw_params)
    assert jnp.allclose(out, ref_f32, atol=2e-2, rtol=2e-2), \
        "mismatch vs f32 reference"

    print("KERNEL_OK")
</pallas_src>

<mosaic_0001>
module attributes {stable_mosaic.version = 11 : i64} {
  func.func @kernel(%arg0: i32, %arg1: memref<16x32xbf16, #tpu.memory_space<vmem>>, %arg2: memref<32x64xbf16, #tpu.memory_space<vmem>>, %arg3: memref<1x64xf32, #tpu.memory_space<vmem>>, %arg4: memref<64x32xbf16, #tpu.memory_space<vmem>>, %arg5: memref<1x32xf32, #tpu.memory_space<vmem>>, %arg6: memref<32x16xbf16, #tpu.memory_space<vmem>>, %arg7: memref<1x16xf32, #tpu.memory_space<vmem>>, %arg8: memref<16x16xf32, #tpu.memory_space<vmem>>) attributes {dimension_semantics = [#tpu.dimension_semantics<parallel>], iteration_bounds = array<i64: 1>, scalar_prefetch = 0 : i64, scratch_operands = 0 : i64, tpu.core_type = #tpu.core_type<tc>, window_params = [{transform_indices = @transform_0, window_bounds = array<i64: 16, 32>}, {pipeline_mode = #tpu.pipeline_mode<synchronous>, transform_indices = @transform_1, window_bounds = array<i64: 32, 64>}, {pipeline_mode = #tpu.pipeline_mode<synchronous>, transform_indices = @transform_2, window_bounds = array<i64: 1, 64>}, {pipeline_mode = #tpu.pipeline_mode<synchronous>, transform_indices = @transform_3, window_bounds = array<i64: 64, 32>}, {pipeline_mode = #tpu.pipeline_mode<synchronous>, transform_indices = @transform_4, window_bounds = array<i64: 1, 32>}, {pipeline_mode = #tpu.pipeline_mode<synchronous>, transform_indices = @transform_5, window_bounds = array<i64: 32, 16>}, {pipeline_mode = #tpu.pipeline_mode<synchronous>, transform_indices = @transform_6, window_bounds = array<i64: 1, 16>}, {transform_indices = @transform_7, window_bounds = array<i64: 16, 16>}]} {
    %c0 = arith.constant 0 : index
    %c0_0 = arith.constant 0 : index
    %0 = vector.load %arg1[%c0, %c0_0] : memref<16x32xbf16, #tpu.memory_space<vmem>>, vector<16x32xbf16>
    %c0_1 = arith.constant 0 : index
    %c0_2 = arith.constant 0 : index
    %1 = vector.load %arg2[%c0_1, %c0_2] : memref<32x64xbf16, #tpu.memory_space<vmem>>, vector<32x64xbf16>
    %c0_3 = arith.constant 0 : index
    %c0_4 = arith.constant 0 : index
    %2 = vector.load %arg3[%c0_3, %c0_4] : memref<1x64xf32, #tpu.memory_space<vmem>>, vector<1x64xf32>
    %cst = arith.constant dense<0.000000e+00> : vector<16x64xf32>
    %3 = tpu.matmul %0, %1, %cst {dimension_numbers = #tpu.dot_dimension_numbers<[1], [0], [0], [1], [0, 0, 1, 1], [], []>} : vector<16x32xbf16>, vector<32x64xbf16>, vector<16x64xf32> -> vector<16x64xf32>
    %4 = vector.broadcast %2 : vector<1x64xf32> to vector<16x64xf32>
    %5 = arith.addf %3, %4 : vector<16x64xf32>
    %6 = math.tanh %5 : vector<16x64xf32>
    %7 = arith.mulf %5, %6 : vector<16x64xf32>
    %8 = arith.addf %5, %7 : vector<16x64xf32>
    %9 = arith.truncf %8 : vector<16x64xf32> to vector<16x64xbf16>
    %c0_5 = arith.constant 0 : index
    %c0_6 = arith.constant 0 : index
    %10 = vector.load %arg4[%c0_5, %c0_6] : memref<64x32xbf16, #tpu.memory_space<vmem>>, vector<64x32xbf16>
    %c0_7 = arith.constant 0 : index
    %c0_8 = arith.constant 0 : index
    %11 = vector.load %arg5[%c0_7, %c0_8] : memref<1x32xf32, #tpu.memory_space<vmem>>, vector<1x32xf32>
    %cst_9 = arith.constant dense<0.000000e+00> : vector<16x32xf32>
    %12 = tpu.matmul %9, %10, %cst_9 {dimension_numbers = #tpu.dot_dimension_numbers<[1], [0], [0], [1], [0, 0, 1, 1], [], []>} : vector<16x64xbf16>, vector<64x32xbf16>, vector<16x32xf32> -> vector<16x32xf32>
    %13 = vector.broadcast %11 : vector<1x32xf32> to vector<16x32xf32>
    %14 = arith.addf %12, %13 : vector<16x32xf32>
    %15 = math.tanh %14 : vector<16x32xf32>
    %16 = arith.mulf %14, %15 : vector<16x32xf32>
    %17 = arith.addf %14, %16 : vector<16x32xf32>
    %18 = arith.truncf %17 : vector<16x32xf32> to vector<16x32xbf16>
    %c0_10 = arith.constant 0 : index
    %c0_11 = arith.constant 0 : index
    %19 = vector.load %arg6[%c0_10, %c0_11] : memref<32x16xbf16, #tpu.memory_space<vmem>>, vector<32x16xbf16>
    %c0_12 = arith.constant 0 : index
    %c0_13 = arith.constant 0 : index
    %20 = vector.load %arg7[%c0_12, %c0_13] : memref<1x16xf32, #tpu.memory_space<vmem>>, vector<1x16xf32>
    %cst_14 = arith.constant dense<0.000000e+00> : vector<16x16xf32>
    %21 = tpu.matmul %18, %19, %cst_14 {dimension_numbers = #tpu.dot_dimension_numbers<[1], [0], [0], [1], [0, 0, 1, 1], [], []>} : vector<16x32xbf16>, vector<32x16xbf16>, vector<16x16xf32> -> vector<16x16xf32>
    %22 = vector.broadcast %20 : vector<1x16xf32> to vector<16x16xf32>
    %23 = arith.addf %21, %22 : vector<16x16xf32>
    %24 = math.tanh %23 : vector<16x16xf32>
    %25 = arith.mulf %23, %24 : vector<16x16xf32>
    %26 = arith.addf %23, %25 : vector<16x16xf32>
    %c0_15 = arith.constant 0 : index
    %c0_16 = arith.constant 0 : index
    %27 = vector.load %arg8[%c0_15, %c0_16] : memref<16x16xf32, #tpu.memory_space<vmem>>, vector<16x16xf32>
    tpu.vector_store %arg8[%c0_15, %c0_16], %26 {strides = array<i32>} : memref<16x16xf32, #tpu.memory_space<vmem>>, vector<16x16xf32>,
    return
  }
  func.func @transform_0(%arg0: i32) -> (i32, i32) {
    %c0_i32 = arith.constant 0 : i32
    %c0_i32_0 = arith.constant 0 : i32
    return %arg0, %c0_i32 : i32, i32
  }
  func.func @transform_1(%arg0: i32) -> (i32, i32) {
    %c0_i32 = arith.constant 0 : i32
    %c0_i32_0 = arith.constant 0 : i32
    %c0_i32_1 = arith.constant 0 : i32
    return %c0_i32, %c0_i32_0 : i32, i32
  }
  func.func @transform_2(%arg0: i32) -> (i32, i32) {
    %c0_i32 = arith.constant 0 : i32
    %c0_i32_0 = arith.constant 0 : i32
    %c0_i32_1 = arith.constant 0 : i32
    return %c0_i32, %c0_i32_0 : i32, i32
  }
  func.func @transform_3(%arg0: i32) -> (i32, i32) {
    %c0_i32 = arith.constant 0 : i32
    %c0_i32_0 = arith.constant 0 : i32
    %c0_i32_1 = arith.constant 0 : i32
    return %c0_i32, %c0_i32_0 : i32, i32
  }
  func.func @transform_4(%arg0: i32) -> (i32, i32) {
    %c0_i32 = arith.constant 0 : i32
    %c0_i32_0 = arith.constant 0 : i32
    %c0_i32_1 = arith.constant 0 : i32
    return %c0_i32, %c0_i32_0 : i32, i32
  }
  func.func @transform_5(%arg0: i32) -> (i32, i32) {
    %c0_i32 = arith.constant 0 : i32
    %c0_i32_0 = arith.constant 0 : i32
    %c0_i32_1 = arith.constant 0 : i32
    return %c0_i32, %c0_i32_0 : i32, i32
  }
  func.func @transform_6(%arg0: i32) -> (i32, i32) {
    %c0_i32 = arith.constant 0 : i32
    %c0_i32_0 = arith.constant 0 : i32
    %c0_i32_1 = arith.constant 0 : i32
    return %c0_i32, %c0_i32_0 : i32, i32
  }
  func.func @transform_7(%arg0: i32) -> (i32, i32) {
    %c0_i32 = arith.constant 0 : i32
    %c0_i32_0 = arith.constant 0 : i32
    return %arg0, %c0_i32 : i32, i32
  }
}

</mosaic_0001>

<llo_original>
// kernel: kan_forward.1
$region0: #{kan_forward.1}
  #allocation0 [shape = 'u32[]', space=smem, size = 0x4, offset = 0x4, fixed_abs, tag = 'smem constant byte address 0x4 - core index']
  #allocation1 [shape = 'u32[144,128]{1,0:T(1,128)}', space=vmem, size = 0x12000, scoped, tag = 'internal scratch']
  %s0 = inlined_call_operand.vmem [shape: bf16[16,32], index: 0, kind: input, shape index: {}]
  %s1 = inlined_call_operand.vmem [shape: bf16[32,64], index: 1, kind: input, shape index: {}]
  %s2 = inlined_call_operand.vmem [shape: f32[1,64], index: 2, kind: input, shape index: {}]
  %s3 = inlined_call_operand.vmem [shape: bf16[64,32], index: 3, kind: input, shape index: {}]
  %s4 = inlined_call_operand.vmem [shape: f32[1,32], index: 4, kind: input, shape index: {}]
  %s5 = inlined_call_operand.vmem [shape: bf16[32,16], index: 5, kind: input, shape index: {}]
  %s6 = inlined_call_operand.vmem [shape: f32[1,16], index: 6, kind: input, shape index: {}]
  %s7 = inlined_call_operand.vmem [shape: f32[16,16], index: 7, kind: output, shape index: {}]
  %s8 = sld [smem:[#allocation0]]
  $region38: #{kan_forward.1} parent=0
    _
  %s10 = ssub.s32 1, %s8
  %s11 = scalar_select 0, %s10, %s8
  // Predicated region
  $region2: #{kan_forward.1} parent=0 // pred_check
    _
  $region3: #{kan_forward.1} parent=0 // pred_check_branch
    %13 = sbr.rel (0) target = $region5
  $region4: #{kan_forward.1} parent=0 // pred_region
    _
  $region5: #{kan_forward.1} parent=0 // pred_fallthru
    _
  // Predicated region
  $region6: #{kan_forward.1} parent=0 // pred_check
    _
  $region7: #{kan_forward.1} parent=0 // pred_check_branch
    %15 = sbr.rel (0) target = $region9
  $region8: #{kan_forward.1} parent=0 // pred_region
    _
  $region9: #{kan_forward.1} parent=0 // pred_fallthru
    _
  // Predicated region
  $region10: #{kan_forward.1} parent=0 // pred_check
    _
  $region11: #{kan_forward.1} parent=0 // pred_check_branch
    %17 = sbr.rel (0) target = $region13
  $region12: #{kan_forward.1} parent=0 // pred_region
    _
  $region13: #{kan_forward.1} parent=0 // pred_fallthru
    _
  // Predicated region
  $region14: #{kan_forward.1} parent=0 // pred_check
    _
  $region15: #{kan_forward.1} parent=0 // pred_check_branch
    %19 = sbr.rel (0) target = $region17
  $region16: #{kan_forward.1} parent=0 // pred_region
    _
  $region17: #{kan_forward.1} parent=0 // pred_fallthru
    _
  // Predicated region
  $region18: #{kan_forward.1} parent=0 // pred_check
    _
  $region19: #{kan_forward.1} parent=0 // pred_check_branch
    %21 = sbr.rel (0) target = $region21
  $region20: #{kan_forward.1} parent=0 // pred_region
    _
  $region21: #{kan_forward.1} parent=0 // pred_fallthru
    _
  // Predicated region
  $region22: #{kan_forward.1} parent=0 // pred_check
    _
  $region23: #{kan_forward.1} parent=0 // pred_check_branch
    %23 = sbr.rel (0) target = $region25
  $region24: #{kan_forward.1} parent=0 // pred_region
    _
  $region25: #{kan_forward.1} parent=0 // pred_fallthru
    _
  // Predicated region
  $region26: #{kan_forward.1} parent=0 // pred_check
    _
  $region27: #{kan_forward.1} parent=0 // pred_check_branch
    %25 = sbr.rel (0) target = $region29
  $region28: #{kan_forward.1} parent=0 // pred_region
    _
  $region29: #{kan_forward.1} parent=0 // pred_fallthru
    _
  %v27 = vld [vmem:[%s0] sm:$0xf]
  %v28 = vld [vmem:[%s0 + $0x4] sm:$0xf]
  %v29 = vld [vmem:[%s1] sm:$0xf]
  %v30 = vld [vmem:[%s1 + $0x4] sm:$0xf]
  %v31 = vld [vmem:[%s1 + $0x8] sm:$0xf]
  %v32 = vld [vmem:[%s1 + $0xc] sm:$0xf]
  %v33 = vld [vmem:[%s2] sm:$0x1]
  %v35 = vlaneseq
  %v36 = vshrl.u32 %v35, 7
  %v37 = vsub.s32 0, %v36
  %v38 = vrot.slane %v33, %v37
  %v42 = vunpack.c.l.b16 %v27
  %v43 = vunpack.c.l.b16 %v28
  %v44 = vpack.c.b16 %v43, %v42
  %v49 = vunpack.c.l.b16 %v29
  %v50 = vunpack.c.l.b16 %v30
  %v51 = vunpack.c.l.b16 %v31
  %v52 = vunpack.c.l.b16 %v32
  %v53 = vpack.c.b16 %v50, %v49
  %v54 = vpack.c.b16 %v52, %v51
  %vm57 = vcmask 261120
  %v59 = vsel %vm57, %v44, 0
  %61 = vmatprep.subr.bf16.mxu0 0
  %62 = vmatpush1.bf16.msra.mxu0 %v53
  %63 = vmatprep.subr.bf16.mxu0 0
  %64 = vmatpush1.bf16.msra.mxu0 %v54
  %65 = vmatprep.subr.bf16.mxu0 0
  %66 = vmatpush1.bf16.msra.mxu0 0
  %67 = vmatprep.subr.bf16.mxu0 0
  %68 = vmatpush1.bf16.msra.mxu0 0
  %69 = vmatprep.subr.bf16.mxu0 0
  %70 = vmatpush1.bf16.msra.mxu0 0
  %71 = vmatprep.subr.bf16.mxu0 0
  %72 = vmatpush1.bf16.msra.mxu0 0
  %73 = vmatprep.subr.bf16.mxu0 0
  %74 = vmatpush1.bf16.msra.mxu0 0
  %75 = vmatprep.subr.bf16.mxu0 0
  %76 = vmatpush1.bf16.msra.mxu0 0
  %77 = vmatprep.subr.bf16.mxu0 0
  %78 = vmatpush1.bf16.msra.mxu0 0
  %79 = vmatprep.subr.bf16.mxu0 0
  %80 = vmatpush1.bf16.msra.mxu0 0
  %81 = vmatprep.subr.bf16.mxu0 0
  %82 = vmatpush1.bf16.msra.mxu0 0
  %83 = vmatprep.subr.bf16.mxu0 0
  %84 = vmatpush1.bf16.msra.mxu0 0
  %85 = vmatprep.subr.bf16.mxu0 0
  %86 = vmatpush1.bf16.msra.mxu0 0
  %87 = vmatprep.subr.bf16.mxu0 0
  %88 = vmatpush1.bf16.msra.mxu0 0
  %89 = vmatprep.subr.bf16.mxu0 0
  %90 = vmatpush1.bf16.msra.mxu0 0
  %91 = vmatprep.subr.bf16.mxu0 0
  %92 = vmatpush1.bf16.msra.mxu0 0
  %93 = vmatprep.mubr.bf16.mxu0 0
  %94 = vmatmul.mubr.bf16.gmra.mrb[0].mxu0 %v59
  %v95 = vpop.f32.mrb[0].mxu0
  %v96 = vadd.f32 %v38, %v95
  %v97 = vpop.f32.mrb[0].mxu0
  %v98 = vpop.f32.mrb[0].mxu0
  %v99 = vadd.f32 %v38, %v98
  %v100 = vpop.f32.mrb[0].mxu0
  %101 = vdwg.mxu0
  %v102 = vtanh.pop %v96
  %v103 = vtanh.pop %v99
  %v104 = vmul.f32 %v96, %v102
  %v105 = vmul.f32 %v99, %v103
  %v106 = vadd.f32 %v96, %v104
  %v107 = vadd.f32 %v99, %v105
  %v108 = vpack.c.bf16 %v107, %v106
  %v109 = vld [vmem:[%s3] sm:$0xf]
  %v110 = vld [vmem:[%s3 + $0x4] sm:$0xf]
  %v111 = vld [vmem:[%s3 + $0x8] sm:$0xf]
  %v112 = vld [vmem:[%s3 + $0xc] sm:$0xf]
  %v113 = vld [vmem:[%s3 + $0x10] sm:$0xf]
  %v114 = vld [vmem:[%s3 + $0x14] sm:$0xf]
  %v115 = vld [vmem:[%s3 + $0x18] sm:$0xf]
  %v116 = vld [vmem:[%s3 + $0x1c] sm:$0xf]
  %v117 = vld [vmem:[%s4] sm:$0x1]
  %v119 = vlaneseq
  %v120 = vshrl.u32 %v119, 7
  %v121 = vsub.s32 0, %v120
  %v122 = vrot.slane %v117, %v121
  %v132 = vunpack.c.l.b16 %v109
  %v133 = vunpack.c.l.b16 %v110
  %v134 = vunpack.c.l.b16 %v111
  %v135 = vunpack.c.l.b16 %v112
  %v136 = vunpack.c.l.b16 %v113
  %v137 = vunpack.c.l.b16 %v114
  %v138 = vunpack.c.l.b16 %v115
  %v139 = vunpack.c.l.b16 %v116
  %v140 = vpack.c.b16 %v133, %v132
  %v141 = vpack.c.b16 %v135, %v134
  %v142 = vpack.c.b16 %v137, %v136
  %v143 = vpack.c.b16 %v139, %v138
  %vm148 = vcmask 523264
  %v150 = vsel %vm148, %v108, 0
  %152 = vmatprep.subr.bf16.mxu0 0
  %153 = vmatpush1.bf16.msra.mxu0 %v140
  %154 = vmatprep.subr.bf16.mxu0 0
  %155 = vmatpush1.bf16.msra.mxu0 %v141
  %156 = vmatprep.subr.bf16.mxu0 0
  %157 = vmatpush1.bf16.msra.mxu0 %v142
  %158 = vmatprep.subr.bf16.mxu0 0
  %159 = vmatpush1.bf16.msra.mxu0 %v143
  %160 = vmatprep.subr.bf16.mxu0 0
  %161 = vmatpush1.bf16.msra.mxu0 0
  %162 = vmatprep.subr.bf16.mxu0 0
  %163 = vmatpush1.bf16.msra.mxu0 0
  %164 = vmatprep.subr.bf16.mxu0 0
  %165 = vmatpush1.bf16.msra.mxu0 0
  %166 = vmatprep.subr.bf16.mxu0 0
  %167 = vmatpush1.bf16.msra.mxu0 0
  %168 = vmatprep.subr.bf16.mxu0 0
  %169 = vmatpush1.bf16.msra.mxu0 0
  %170 = vmatprep.subr.bf16.mxu0 0
  %171 = vmatpush1.bf16.msra.mxu0 0
  %172 = vmatprep.subr.bf16.mxu0 0
  %173 = vmatpush1.bf16.msra.mxu0 0
  %174 = vmatprep.subr.bf16.mxu0 0
  %175 = vmatpush1.bf16.msra.mxu0 0
  %176 = vmatprep.subr.bf16.mxu0 0
  %177 = vmatpush1.bf16.msra.mxu0 0
  %178 = vmatprep.subr.bf16.mxu0 0
  %179 = vmatpush1.bf16.msra.mxu0 0
  %180 = vmatprep.subr.bf16.mxu0 0
  %181 = vmatpush1.bf16.msra.mxu0 0
  %182 = vmatprep.subr.bf16.mxu0 0
  %183 = vmatpush1.bf16.msra.mxu0 0
  %184 = vmatprep.mubr.bf16.mxu0 0
  %185 = vmatmul.mubr.bf16.gmra.mrb[0].mxu0 %v150
  %v186 = vpop.f32.mrb[0].mxu0
  %v187 = vadd.f32 %v122, %v186
  %v188 = vpop.f32.mrb[0].mxu0
  %v189 = vpop.f32.mrb[0].mxu0
  %v190 = vadd.f32 %v122, %v189
  %v191 = vpop.f32.mrb[0].mxu0
  %192 = vdwg.mxu0
  %v193 = vtanh.pop %v187
  %v194 = vtanh.pop %v190
  %v195 = vmul.f32 %v187, %v193
  %v196 = vmul.f32 %v190, %v194
  %v197 = vadd.f32 %v187, %v195
  %v198 = vadd.f32 %v190, %v196
  %v199 = vpack.c.bf16 %v198, %v197
  %v200 = vld [vmem:[%s5] sm:$0xf]
  %v201 = vld [vmem:[%s5 + $0x4] sm:$0xf]
  %v202 = vld [vmem:[%s5 + $0x8] sm:$0xf]
  %v203 = vld [vmem:[%s5 + $0xc] sm:$0xf]
  %v204 = vld [vmem:[%s6] sm:$0x1]
  %v206 = vlaneseq
  %v207 = vshrl.u32 %v206, 7
  %v208 = vsub.s32 0, %v207
  %v209 = vrot.slane %v204, %v208
  %v215 = vunpack.c.l.b16 %v200
  %v216 = vunpack.c.l.b16 %v201
  %v217 = vunpack.c.l.b16 %v202
  %v218 = vunpack.c.l.b16 %v203
  %v219 = vpack.c.b16 %v216, %v215
  %v220 = vpack.c.b16 %v218, %v217
  %v224 = vsel %vm57, %v199, 0
  %226 = vmatprep.subr.bf16.mxu0 0
  %227 = vmatpush1.bf16.msra.mxu0 %v219
  %228 = vmatprep.subr.bf16.mxu0 0
  %229 = vmatpush1.bf16.msra.mxu0 %v220
  %230 = vmatprep.subr.bf16.mxu0 0
  %231 = vmatpush1.bf16.msra.mxu0 0
  %232 = vmatprep.subr.bf16.mxu0 0
  %233 = vmatpush1.bf16.msra.mxu0 0
  %234 = vmatprep.subr.bf16.mxu0 0
  %235 = vmatpush1.bf16.msra.mxu0 0
  %236 = vmatprep.subr.bf16.mxu0 0
  %237 = vmatpush1.bf16.msra.mxu0 0
  %238 = vmatprep.subr.bf16.mxu0 0
  %239 = vmatpush1.bf16.msra.mxu0 0
  %240 = vmatprep.subr.bf16.mxu0 0
  %241 = vmatpush1.bf16.msra.mxu0 0
  %242 = vmatprep.subr.bf16.mxu0 0
  %243 = vmatpush1.bf16.msra.mxu0 0
  %244 = vmatprep.subr.bf16.mxu0 0
  %245 = vmatpush1.bf16.msra.mxu0 0
  %246 = vmatprep.subr.bf16.mxu0 0
  %247 = vmatpush1.bf16.msra.mxu0 0
  %248 = vmatprep.subr.bf16.mxu0 0
  %249 = vmatpush1.bf16.msra.mxu0 0
  %250 = vmatprep.subr.bf16.mxu0 0
  %251 = vmatpush1.bf16.msra.mxu0 0
  %252 = vmatprep.subr.bf16.mxu0 0
  %253 = vmatpush1.bf16.msra.mxu0 0
  %254 = vmatprep.subr.bf16.mxu0 0
  %255 = vmatpush1.bf16.msra.mxu0 0
  %256 = vmatprep.subr.bf16.mxu0 0
  %257 = vmatpush1.bf16.msra.mxu0 0
  %258 = vmatprep.mubr.bf16.mxu0 0
  %259 = vmatmul.mubr.bf16.gmra.mrb[0].mxu0 %v224
  %v260 = vpop.f32.mrb[0].mxu0
  %v261 = vadd.f32 %v209, %v260
  %v262 = vpop.f32.mrb[0].mxu0
  %v263 = vpop.f32.mrb[0].mxu0
  %v264 = vadd.f32 %v209, %v263
  %v265 = vpop.f32.mrb[0].mxu0
  %266 = vdwg.mxu0
  %v267 = vtanh.pop %v261
  %v268 = vtanh.pop %v264
  %v269 = vmul.f32 %v261, %v267
  %v270 = vmul.f32 %v264, %v268
  %v271 = vadd.f32 %v261, %v269
  %v272 = vadd.f32 %v264, %v270
  %vm273 = vcmask 130048
  %274 = vst.msk [vmem:[%s7] sm:$0xff] %vm273, %v271
  %275 = vst.msk [vmem:[%s7 + $0x8] sm:$0xff] %vm273, %v272
  // Predicated region
  $region30: #{kan_forward.1} parent=0 // pred_check
    _
  $region31: #{kan_forward.1} parent=0 // pred_check_branch
    %277 = sbr.rel (0) target = $region33
  $region32: #{kan_forward.1} parent=0 // pred_region
    _
  $region33: #{kan_forward.1} parent=0 // pred_fallthru
    _
  // Predicated region
  $region34: #{kan_forward.1} parent=0 // pred_check
    _
  $region35: #{kan_forward.1} parent=0 // pred_check_branch
    %279 = sbr.rel (0) target = $region37
  $region36: #{kan_forward.1} parent=0 // pred_region
    _
  $region37: #{kan_forward.1} parent=0 // pred_fallthru
    _

</llo_original>
